<compile_context>
chip_gen: v7x
topology: tpu7x:2x2x1
jax: 0.10.0
libtpu: 0.0.40
codegen_flags: <defaults>
</compile_context>

<pallas_src>
import functools

import jax
import jax.numpy as jnp
from jax.experimental import pallas as pl
from jax.experimental.pallas import tpu as pltpu

_LOG2 = 0.6931471805599453
_SOFTPLUS_THRESHOLD = 20.0            # torch.nn.functional.softplus default
_WIDTHS = (1024, 512, 256, 128)       # lane-dense slab widths (multiples of 128)
_MAX_BLOCK_BYTES = 4 * 1024 * 1024    # per-buffer block target (v6e/v7x)
_VMEM_LIMIT_BYTES = 32 * 1024 * 1024  # explicit scoped-VMEM request (safe on all gens)


def _carlosplus_kernel(x_ref, o_ref, *, compute_dtype):
    x = x_ref[...].astype(compute_dtype)
    # PyTorch softplus semantics: linear above the threshold.  exp() overflow
    # in the untaken branch is benign (where() still selects x there, no NaN).
    sp = jnp.where(x > _SOFTPLUS_THRESHOLD, x, jnp.log1p(jnp.exp(x)))
    o_ref[...] = (2.0 * (sp - _LOG2)).astype(o_ref.dtype)


def _sublane_pack(dtype) -> int:
    # Native packed sublane multiple: 8 for 4-byte, 16 for 2-byte, 32 for 1-byte.
    return max(8, 32 // jnp.dtype(dtype).itemsize)


def _round_up(x: int, m: int) -> int:
    return ((x + m - 1) // m) * m


@functools.lru_cache(maxsize=None)
def _target_block_bytes() -> int:
    """Generation-aware per-buffer block size (in + out, double buffered)."""
    vmem = None
    try:
        vmem = getattr(pltpu.get_tpu_info(), "vmem_capacity_bytes", None)
    except Exception:
        vmem = None
    if not vmem:
        vmem = 64 * 1024 * 1024  # conservative default: v7x per-TensorCore VMEM
    # 4 live buffers (2 operands x double buffering): keep total <= VMEM / 4.
    return max(1024 * 1024, min(_MAX_BLOCK_BYTES, vmem // 16))


@functools.lru_cache(maxsize=None)
def _native_bf16_compute() -> bool:
    """True on chips with a bf16 VPU/EUP (v6e / v7x); keep f32 elsewhere."""
    try:
        kind = jax.devices()[0].device_kind.lower()
    except Exception:
        return False
    if any(tag in kind for tag in ("v2", "v3", "v4", "v5")):
        return False
    return ("v6" in kind) or ("v7" in kind) or ("7x" in kind)


def _carlosplus_xla(x: jax.Array) -> jax.Array:
    """Fused XLA reference / fallback (only used when n is not divisible by 128)."""
    xf = x.astype(jnp.float32)
    sp = jnp.where(xf > _SOFTPLUS_THRESHOLD, xf,
                   jnp.log1p(jnp.exp(jnp.minimum(xf, _SOFTPLUS_THRESHOLD))))
    return (2.0 * (sp - _LOG2)).astype(x.dtype)


def _run_slab(x2d: jax.Array, rows: int, width: int, dtype, n: int) -> jax.Array:
    itemsize = jnp.dtype(dtype).itemsize
    pack = _sublane_pack(dtype)

    block_rows = max(pack,
                     (_target_block_bytes() // (width * itemsize)) // pack * pack)
    if rows >= 2 * pack:
        # Keep at least 2 grid steps so both v7x TensorCores get work on the
        # "parallel" axis; a non-dividing edge block is masked by the pipeline.
        block_rows = max(pack, min(block_rows, _round_up(pl.cdiv(rows, 2), pack)))
    else:
        block_rows = rows  # tiny tensor: single full-extent block

    grid = (pl.cdiv(rows, block_rows),)

    compute_dtype = (jnp.bfloat16
                     if (dtype == jnp.bfloat16 and _native_bf16_compute())
                     else jnp.float32)
    kernel = functools.partial(_carlosplus_kernel, compute_dtype=compute_dtype)

    return pl.pallas_call(
        kernel,
        out_shape=jax.ShapeDtypeStruct((rows, width), dtype),
        grid_spec=pltpu.PrefetchScalarGridSpec(
            num_scalar_prefetch=0,
            grid=grid,
            in_specs=[pl.BlockSpec((block_rows, width), lambda i: (i, 0))],
            out_specs=pl.BlockSpec((block_rows, width), lambda i: (i, 0)),
        ),
        compiler_params=pltpu.CompilerParams(
            dimension_semantics=("parallel",),
            vmem_limit_bytes=_VMEM_LIMIT_BYTES,
        ),
        cost_estimate=pl.CostEstimate(
            flops=4 * n,
            transcendentals=2 * n,
            bytes_accessed=2 * n * itemsize,
        ),
    )(x2d)


def carlos_plus(x: jax.Array) -> jax.Array:
    """Applies y = 2*(softplus(x) - log(2)) elementwise via a Pallas TPU kernel."""
    orig_shape = x.shape
    n = x.size
    if n == 0:
        return x

    width = next((w for w in _WIDTHS if n % w == 0), None)
    if width is None:
        # n not divisible by 128 (rare): a single fused XLA elementwise op moves
        # exactly 2*n*itemsize bytes, which is strictly cheaper than any
        # pad/slice or prefix/concat assembly around a Pallas call.
        return _carlosplus_xla(x)

    rows = n // width
    y2d = _run_slab(x.reshape(rows, width), rows, width, x.dtype, n)
    return y2d.reshape(orig_shape)


if __name__ == "__main__":
    key = jax.random.PRNGKey(0)

    # Small NCHW activation input consistent with the module's typical use.
    x = jax.random.normal(key, (2, 4, 16, 16), dtype=jnp.float32) * 3.0
    # Exercise the softplus threshold branch explicitly.
    x = x.at[0, 0, 0, 0].set(25.0)

    y = carlos_plus(x)
    jax.block_until_ready(y)

    y_ref = _carlosplus_xla(x)
    assert y.shape == x.shape and y.dtype == x.dtype
    assert jnp.max(jnp.abs(y - y_ref)) < 1e-5

    k1, k2, k3 = jax.random.split(jax.random.PRNGKey(1), 3)

    # Exercises the masked (non-dividing) edge block: 24 rows, 16-row blocks.
    x_edge = jax.random.normal(k1, (3, 8, 32, 32), dtype=jnp.float32) * 3.0
    y_edge = carlos_plus(x_edge)
    jax.block_until_ready(y_edge)
    assert jnp.max(jnp.abs(y_edge - _carlosplus_xla(x_edge))) < 1e-5

    # Exercises the multi-step pipelined grid path (1024 rows, 2 steps).
    x_big = jax.random.normal(k2, (8, 16, 128, 64), dtype=jnp.float32) * 3.0
    y_big = carlos_plus(x_big)
    jax.block_until_ready(y_big)
    assert jnp.max(jnp.abs(y_big - _carlosplus_xla(x_big))) < 1e-5

    # Truly ragged element count (n % 128 != 0) -> fused XLA fallback path.
    x_rag = jax.random.normal(k3, (7, 9, 5), dtype=jnp.float32) * 3.0
    y_rag = carlos_plus(x_rag)
    jax.block_until_ready(y_rag)
    assert jnp.max(jnp.abs(y_rag - _carlosplus_xla(x_rag))) < 1e-5

    print("KERNEL_OK")
</pallas_src>

<mosaic_0001>
module attributes {stable_mosaic.version = 11 : i64} {
  func.func @_carlosplus_kernel(%arg0: i32, %arg1: memref<2x1024xf32, #tpu.memory_space<vmem>>, %arg2: memref<2x1024xf32, #tpu.memory_space<vmem>>) attributes {dimension_semantics = [#tpu.dimension_semantics<parallel>], iteration_bounds = array<i64: 1>, scalar_prefetch = 0 : i64, scratch_operands = 0 : i64, tpu.core_type = #tpu.core_type<tc>, window_params = [{transform_indices = @transform_0, window_bounds = array<i64: 2, 1024>}, {transform_indices = @transform_1, window_bounds = array<i64: 2, 1024>}]} {
    %c0 = arith.constant 0 : index
    %c0_0 = arith.constant 0 : index
    %0 = vector.load %arg1[%c0, %c0_0] : memref<2x1024xf32, #tpu.memory_space<vmem>>, vector<2x1024xf32>
    %cst = arith.constant 2.000000e+01 : f32
    %1 = vector.broadcast %cst : f32 to vector<2x1024xf32>
    %2 = arith.cmpf ogt, %0, %1 : vector<2x1024xf32>
    %3 = math.exp %0 : vector<2x1024xf32>
    %4 = math.log1p %3 : vector<2x1024xf32>
    %5 = arith.select %2, %0, %4 : vector<2x1024xi1>, vector<2x1024xf32>
    %cst_1 = arith.constant 0.693147182 : f32
    %6 = vector.broadcast %cst_1 : f32 to vector<2x1024xf32>
    %7 = arith.subf %5, %6 : vector<2x1024xf32>
    %cst_2 = arith.constant 2.000000e+00 : f32
    %8 = vector.broadcast %cst_2 : f32 to vector<2x1024xf32>
    %9 = arith.mulf %8, %7 : vector<2x1024xf32>
    %c0_3 = arith.constant 0 : index
    %c0_4 = arith.constant 0 : index
    %10 = vector.load %arg2[%c0_3, %c0_4] : memref<2x1024xf32, #tpu.memory_space<vmem>>, vector<2x1024xf32>
    tpu.vector_store %arg2[%c0_3, %c0_4], %9 {strides = array<i32>} : memref<2x1024xf32, #tpu.memory_space<vmem>>, vector<2x1024xf32>,
    return
  }
  func.func @transform_0(%arg0: i32) -> (i32, i32) {
    %c0_i32 = arith.constant 0 : i32
    %c0_i32_0 = arith.constant 0 : i32
    return %arg0, %c0_i32 : i32, i32
  }
  func.func @transform_1(%arg0: i32) -> (i32, i32) {
    %c0_i32 = arith.constant 0 : i32
    %c0_i32_0 = arith.constant 0 : i32
    return %arg0, %c0_i32 : i32, i32
  }
}

</mosaic_0001>

<llo_original>
// kernel: tpu_custom_call.1
$region0: #{tpu_custom_call.1}
  #allocation0 [shape = 'u32[]', space=smem, size = 0x4, offset = 0x4, fixed_abs, tag = 'smem constant byte address 0x4 - core index']
  #allocation1 [shape = 'u32[144,128]{1,0:T(1,128)}', space=vmem, size = 0x12000, scoped, tag = 'internal scratch']
  %s0 = inlined_call_operand.hbm [shape: f32[2,1024], index: 0, kind: input, shape index: {}]
  %s1 = inlined_call_operand.hbm [shape: f32[2,1024], index: 1, kind: output, shape index: {}]
  %s2 = sld [smem:[#allocation0]]
  $region18: #{tpu_custom_call.1} parent=0
    _
  %s4 = ssub.s32 1, %s2
  %s5 = scalar_select 0, %s4, %s2
  $region1: #{tpu_custom_call.1} parent=0
    #allocation2 [shape = 'u8[8192]{0}', space=vmem, size = 0x2000, scoped, tag = 'input window, operand 0, single buffered']
    #allocation3 [shape = 's32[1]{0}', space=sflag, size = 0x4, scoped, tag = 'scoped memory for tpu_custom_call.1']
    #allocation4 [shape = 's32[1]{0}', space=sflag, size = 0x4, scoped, tag = 'scoped memory for tpu_custom_call.1']
    #allocation5 [shape = 'u8[8192]{0}', space=vmem, size = 0x2000, scoped, tag = 'output window, operand 0, single buffered']
    %6 = vsyncpa [#allocation3], 0
    %7 = vsyncpa [#allocation4], 0
    // Predicated region
    $region2: #{tpu_custom_call.1} parent=1 // pred_check
      _
    $region3: #{tpu_custom_call.1} parent=1 // pred_check_branch
      %9 = sbr.rel (0) target = $region5
    $region4: #{tpu_custom_call.1} parent=1 // pred_region
      %s11 = ssub.s32 256, 256
      %12 = vsyncadd [#allocation3], %s11
      %s14 = sshll.u32 [#allocation2], 4
      %s15 = int_to_ptr.vmem [resolvable:$true] %s14
      %17 = dma.hbm_to_vmem [thread:$0]  %s0, 256, %s15, [#allocation3]
    $region5: #{tpu_custom_call.1} parent=1 // pred_fallthru
      _
    // Predicated region
    $region6: #{tpu_custom_call.1} parent=1 // pred_check
      _
    $region7: #{tpu_custom_call.1} parent=1 // pred_check_branch
      %19 = sbr.rel (0) target = $region9
    $region8: #{tpu_custom_call.1} parent=1 // pred_region
      %20 = dma.done [#allocation3], 256
    $region9: #{tpu_custom_call.1} parent=1 // pred_fallthru
      _
    %v21 = vld [vmem:[#allocation2] sm:$0xff]
    %v22 = vld [vmem:[#allocation2 + $0x8] sm:$0xff]
    %vm23 = vcmp.gt.f32.partialorder %v21, 20.0
    %vm24 = vcmp.gt.f32.partialorder %v22, 20.0
    %v25 = vmul.f32 %v21, 1.442695
    %v26 = vpow.pop %v25
    %v27 = vmul.f32 %v22, 1.442695
    %v28 = vpow.pop %v27
    %v29 = vadd.f32 %v26, 1.0
    %v30 = vlog2.pop %v29
    %v31 = vmul.f32 %v30, 0.6931472
    %v32 = vmul.f32 -0.5, %v26
    %v33 = vadd.f32 %v32, 1.0
    %v34 = vmul.f32 %v33, %v26
    %v35 = vand.u32 2147483647, %v26
    %vm36 = vcmp.lt.f32.partialorder %v35, 0.0004427343
    %v37 = vsel %vm36, %v34, %v31
    %v38 = vadd.f32 %v28, 1.0
    %v39 = vlog2.pop %v38
    %v40 = vmul.f32 %v39, 0.6931472
    %v41 = vmul.f32 -0.5, %v28
    %v42 = vadd.f32 %v41, 1.0
    %v43 = vmul.f32 %v42, %v28
    %v44 = vand.u32 2147483647, %v28
    %vm45 = vcmp.lt.f32.partialorder %v44, 0.0004427343
    %v46 = vsel %vm45, %v43, %v40
    %v47 = vsel %vm23, %v21, %v37
    %v48 = vsel %vm24, %v22, %v46
    %v49 = vsub.f32 %v47, 0.6931472
    %v50 = vsub.f32 %v48, 0.6931472
    %v51 = vmul.f32 %v49, 2.0
    %v52 = vmul.f32 %v50, 2.0
    %53 = vst [vmem:[#allocation5] sm:$0xff] %v51
    %54 = vst [vmem:[#allocation5 + $0x8] sm:$0xff] %v52
    // Predicated region
    $region10: #{tpu_custom_call.1} parent=1 // pred_check
      _
    $region11: #{tpu_custom_call.1} parent=1 // pred_check_branch
      %56 = sbr.rel (0) target = $region13
    $region12: #{tpu_custom_call.1} parent=1 // pred_region
      %s58 = ssub.s32 256, 256
      %59 = vsyncadd [#allocation4], %s58
      %s61 = sshll.u32 [#allocation5], 4
      %s62 = int_to_ptr.vmem [resolvable:$true] %s61
      %64 = dma.vmem_to_hbm [thread:$0]  %s62, 256, %s1, [#allocation4]
    $region13: #{tpu_custom_call.1} parent=1 // pred_fallthru
      _
    // Predicated region
    $region14: #{tpu_custom_call.1} parent=1 // pred_check
      _
    $region15: #{tpu_custom_call.1} parent=1 // pred_check_branch
      %66 = sbr.rel (0) target = $region17
    $region16: #{tpu_custom_call.1} parent=1 // pred_region
      %67 = dma.done [#allocation4], 256
    $region17: #{tpu_custom_call.1} parent=1 // pred_fallthru
      _
    %68 = vsyncpa [#allocation3], 1
    %69 = vsyncpa [#allocation4], 1

</llo_original>
